<compile_context>
chip_gen: v6e
topology: v6e:2x2x1
jax: 0.10.0
libtpu: 0.0.40
codegen_flags: <defaults>
</compile_context>

<pallas_src>
import jax
import jax.numpy as jnp
from jax import lax
from jax.experimental import pallas as pl
from jax.experimental.pallas import tpu as pltpu


_LANE_CANDIDATES = (4096, 2048, 1024, 512, 384, 256, 128)
_TARGET_BLOCK_BYTES = 4 * 1024 * 1024     # ~4 MiB per streaming input block
_NUM_SHARDS = 2                           # leading "parallel" axis (dual-TC on v7x)
_VMEM_LIMIT_BYTES = 40 * 1024 * 1024      # 2 inputs x 2 bufs x 4 MiB + acc << 40 MiB


def _make_neg_loss_kernel(block_rows, lane, n_rows, blocks_per_shard, fold, needs_mask):
    """Build the streaming negative-loss reduction kernel (all params static)."""

    def kernel(p_ref, t_ref, out_ref, acc_ref):
        i = pl.program_id(1)                       # reduction axis (last)

        @pl.when(i == 0)
        def _init():
            acc_ref[...] = jnp.zeros_like(acc_ref)

        p = p_ref[...].astype(jnp.float32)
        t = t_ref[...].astype(jnp.float32)
        one_minus_t = 1.0 - t
        gt2 = one_minus_t * one_minus_t
        # log(1 - p) * p^2 * (1 - t)^4   (matches the PyTorch reference)
        term = jnp.log(1.0 - p) * (p * p) * (gt2 * gt2)

        if needs_mask:
            # Mask rows past the real array (ragged last block and any
            # clamped duplicate block from the shard split).
            s = pl.program_id(0)
            row0 = (s * blocks_per_shard + i) * block_rows
            rows = lax.broadcasted_iota(jnp.int32, (block_rows, lane), 0) + row0
            term = jnp.where(rows < n_rows, term, 0.0)

        if fold:
            # Sublane-folded partials into a small (8, lane) accumulator.
            acc_ref[...] += term.reshape(-1, 8, lane).sum(axis=0)
        else:
            acc_ref[...] += term

        @pl.when(i == pl.num_programs(1) - 1)
        def _finalize():
            out_ref[0, 0] = jnp.sum(acc_ref[...])

    return kernel


def _choose_lane(total):
    for lane in _LANE_CANDIDATES:
        if total % lane == 0:
            return lane
    return None


def fast_focal_loss(out, target, ind, mask, cat):
    """out, target: (B, C, H, W); ind, cat: (B, M) int; mask: (B, M)."""
    B, C, H, W = out.shape
    HW = H * W
    total = B * C * HW
    itemsize = jnp.dtype(out.dtype).itemsize

    # ---- positive (peak) loss: tiny (B, M) gather + combine in plain XLA.
    flat_idx = cat.astype(jnp.int32) * HW + ind.astype(jnp.int32)           # (B, M)
    pos_pred = jnp.take_along_axis(out.reshape(B, C * HW), flat_idx,
                                   axis=1).astype(jnp.float32)              # (B, M)
    mask_f = mask.astype(jnp.float32)
    num_pos = jnp.sum(mask_f)
    one_minus_pp = 1.0 - pos_pred
    log_pp = jnp.where(mask_f > 0, jnp.log(pos_pred), 0.0)                  # no -inf*0 NaN
    pos_loss = jnp.sum(log_pp * (one_minus_pp * one_minus_pp) * mask_f)

    # ---- negative loss: lane-dense streaming reduction in Pallas.
    lane = _choose_lane(total)
    p_flat = out.reshape(-1)          # free metadata reshape (no HBM copy)
    t_flat = target.reshape(-1)
    if lane is None:
        # Rare fallback: total not a multiple of 128 -> pad (costs one copy).
        lane = 512
        padded = pl.cdiv(total, lane) * lane
        pad = padded - total
        p_flat = jnp.pad(p_flat, (0, pad))    # p = 0 contributes exactly 0
        t_flat = jnp.pad(t_flat, (0, pad))
        n_rows = padded // lane
    else:
        n_rows = total // lane

    if n_rows >= 8:
        target_rows = max(8, (_TARGET_BLOCK_BYTES // (lane * itemsize)) // 8 * 8)
        block_rows = min(target_rows, (n_rows // 8) * 8)
        fold = True                       # block_rows is a multiple of 8
    else:
        block_rows = n_rows               # full-dim block (exempt from (8,128) rule)
        fold = False

    total_blocks = pl.cdiv(n_rows, block_rows)
    num_shards = min(_NUM_SHARDS, total_blocks)
    blocks_per_shard = pl.cdiv(total_blocks, num_shards)
    needs_mask = (n_rows % block_rows != 0) or (num_shards * blocks_per_shard != total_blocks)

    p2d = p_flat.reshape(n_rows, lane)
    t2d = t_flat.reshape(n_rows, lane)

    last_block = total_blocks - 1

    def stream_map(s, i):
        # Clamp so a shard's trailing (excess) step re-reads the last valid
        # block instead of going out of bounds; its rows are masked in-kernel.
        return (jnp.minimum(s * blocks_per_shard + i, last_block), 0)

    kernel = _make_neg_loss_kernel(block_rows, lane, n_rows, blocks_per_shard,
                                   fold, needs_mask)

    acc_shape = (8, lane) if fold else (block_rows, lane)

    cost = pl.CostEstimate(flops=8 * total,
                           transcendentals=total,
                           bytes_accessed=2 * total * itemsize)

    partials = pl.pallas_call(
        kernel,
        out_shape=jax.ShapeDtypeStruct((num_shards, 1), jnp.float32),
        grid=(num_shards, blocks_per_shard),
        in_specs=[
            pl.BlockSpec((block_rows, lane), stream_map),
            pl.BlockSpec((block_rows, lane), stream_map),
        ],
        out_specs=pl.BlockSpec((1, 1), lambda s, i: (s, 0),
                               memory_space=pltpu.MemorySpace.SMEM),
        scratch_shapes=[pltpu.VMEM(acc_shape, jnp.float32)],
        compiler_params=pltpu.CompilerParams(
            dimension_semantics=("parallel", "arbitrary"),
            vmem_limit_bytes=_VMEM_LIMIT_BYTES),
        cost_estimate=cost,
    )(p2d, t2d)

    neg_loss = jnp.sum(partials)
    return jnp.where(num_pos == 0.0, -neg_loss, -(pos_loss + neg_loss) / num_pos)


def _reference(out, target, ind, mask, cat):
    # Pure-JAX reference mirroring the PyTorch module, for sanity checking.
    B, C, H, W = out.shape
    HW = H * W
    mask = mask.astype(jnp.float32)
    gt = jnp.power(1.0 - target, 4)
    neg_loss = jnp.sum(jnp.log(1.0 - out) * jnp.power(out, 2) * gt)
    out_flat = out.reshape(B, C * HW)
    flat_idx = cat * HW + ind
    pos_pred = jnp.take_along_axis(out_flat, flat_idx, axis=1)              # (B, M)
    num_pos = jnp.sum(mask)
    pos_loss = jnp.sum(jnp.log(pos_pred) * jnp.power(1.0 - pos_pred, 2) * mask)
    return jnp.where(num_pos == 0.0, -neg_loss, -(pos_loss + neg_loss) / num_pos)


def _run_case(key, B, C, H, W, M):
    k1, k2, k3, k4, k5 = jax.random.split(key, 5)
    out = jax.nn.sigmoid(jax.random.normal(k1, (B, C, H, W), jnp.float32))
    target = jax.random.uniform(k2, (B, C, H, W), jnp.float32, 0.0, 0.95)
    ind = jax.random.randint(k3, (B, M), 0, H * W, jnp.int32)
    cat = jax.random.randint(k4, (B, M), 0, C, jnp.int32)
    mask = (jax.random.uniform(k5, (B, M)) > 0.3).astype(jnp.float32)

    loss = fast_focal_loss(out, target, ind, mask, cat)
    jax.block_until_ready(loss)
    ref = _reference(out, target, ind, mask, cat)
    assert jnp.allclose(loss, ref, rtol=1e-4, atol=1e-4), (loss, ref)


if __name__ == "__main__":
    key = jax.random.PRNGKey(0)
    k_a, k_b = jax.random.split(key)

    # Primary small case (single block, no masking path).
    _run_case(k_a, B=2, C=4, H=16, W=16, M=8)
    # Ragged / sharded case (exercises the iota mask + 2-shard parallel axis).
    _run_case(k_b, B=2, C=3, H=40, W=40, M=8)

    print("KERNEL_OK")
</pallas_src>

<mosaic_0001>
module attributes {stable_mosaic.version = 11 : i64} {
  func.func @kernel(%arg0: i32, %arg1: i32, %arg2: memref<1x2048xf32, #tpu.memory_space<vmem>>, %arg3: memref<1x2048xf32, #tpu.memory_space<vmem>>, %arg4: memref<1x1xf32, #tpu.memory_space<smem>>, %arg5: memref<1x2048xf32, #tpu.memory_space<vmem>>) attributes {dimension_semantics = [#tpu.dimension_semantics<parallel>, #tpu.dimension_semantics<arbitrary>], iteration_bounds = array<i64: 1, 1>, scalar_prefetch = 0 : i64, scratch_operands = 1 : i64, tpu.core_type = #tpu.core_type<tc>, window_params = [{transform_indices = @transform_0, window_bounds = array<i64: 1, 2048>}, {transform_indices = @transform_1, window_bounds = array<i64: 1, 2048>}, {transform_indices = @transform_2, window_bounds = array<i64: 1, 1>}]} {
    %c0_i32 = arith.constant 0 : i32
    %0 = arith.cmpi eq, %arg1, %c0_i32 : i32
    %1 = arith.extui %0 : i1 to i32
    %c0_i32_0 = arith.constant 0 : i32
    %2 = arith.cmpi ne, %1, %c0_i32_0 : i32
    scf.if %2 {
      %cst_11 = arith.constant 0.000000e+00 : f32
      %21 = vector.broadcast %cst_11 : f32 to vector<1x2048xf32>
      %c0_12 = arith.constant 0 : index
      %c0_13 = arith.constant 0 : index
      %22 = vector.load %arg5[%c0_12, %c0_13] : memref<1x2048xf32, #tpu.memory_space<vmem>>, vector<1x2048xf32>
      tpu.vector_store %arg5[%c0_12, %c0_13], %21 {strides = array<i32>} : memref<1x2048xf32, #tpu.memory_space<vmem>>, vector<1x2048xf32>,
    } else {
    }
    %c0 = arith.constant 0 : index
    %c0_1 = arith.constant 0 : index
    %3 = vector.load %arg2[%c0, %c0_1] : memref<1x2048xf32, #tpu.memory_space<vmem>>, vector<1x2048xf32>
    %c0_2 = arith.constant 0 : index
    %c0_3 = arith.constant 0 : index
    %4 = vector.load %arg3[%c0_2, %c0_3] : memref<1x2048xf32, #tpu.memory_space<vmem>>, vector<1x2048xf32>
    %cst = arith.constant 1.000000e+00 : f32
    %5 = vector.broadcast %cst : f32 to vector<1x2048xf32>
    %6 = arith.subf %5, %4 : vector<1x2048xf32>
    %7 = arith.mulf %6, %6 : vector<1x2048xf32>
    %cst_4 = arith.constant 1.000000e+00 : f32
    %8 = vector.broadcast %cst_4 : f32 to vector<1x2048xf32>
    %9 = arith.subf %8, %3 : vector<1x2048xf32>
    %10 = math.log %9 : vector<1x2048xf32>
    %11 = arith.mulf %3, %3 : vector<1x2048xf32>
    %12 = arith.mulf %10, %11 : vector<1x2048xf32>
    %13 = arith.mulf %7, %7 : vector<1x2048xf32>
    %14 = arith.mulf %12, %13 : vector<1x2048xf32>
    %c0_5 = arith.constant 0 : index
    %c0_6 = arith.constant 0 : index
    %15 = vector.load %arg5[%c0_5, %c0_6] : memref<1x2048xf32, #tpu.memory_space<vmem>>, vector<1x2048xf32>
    %16 = arith.addf %15, %14 : vector<1x2048xf32>
    %c0_7 = arith.constant 0 : index
    %c0_8 = arith.constant 0 : index
    %17 = vector.load %arg5[%c0_7, %c0_8] : memref<1x2048xf32, #tpu.memory_space<vmem>>, vector<1x2048xf32>
    tpu.vector_store %arg5[%c0_7, %c0_8], %16 {strides = array<i32>} : memref<1x2048xf32, #tpu.memory_space<vmem>>, vector<1x2048xf32>,
    %c0_i32_9 = arith.constant 0 : i32
    %18 = arith.cmpi eq, %arg1, %c0_i32_9 : i32
    %19 = arith.extui %18 : i1 to i32
    %c0_i32_10 = arith.constant 0 : i32
    %20 = arith.cmpi ne, %19, %c0_i32_10 : i32
    scf.if %20 {
      %c0_11 = arith.constant 0 : index
      %c0_12 = arith.constant 0 : index
      %21 = vector.load %arg5[%c0_11, %c0_12] : memref<1x2048xf32, #tpu.memory_space<vmem>>, vector<1x2048xf32>
      %22 = vector.shape_cast %21 : vector<1x2048xf32> to vector<1x1x2048xf32>
      %cst_13 = arith.constant dense<0.000000e+00> : vector<1xf32>
      %23 = vector.multi_reduction <add>, %22, %cst_13 [1, 2] : vector<1x1x2048xf32> to vector<1xf32>
      %24 = vector.shape_cast %23 : vector<1xf32> to vector<1x1x1xf32>
      %25 = vector.extract %24[0, 0, 0] : f32 from vector<1x1x1xf32>
      %c0_14 = arith.constant 0 : index
      %c0_15 = arith.constant 0 : index
      %26 = memref.load %arg4[%c0_14, %c0_15] : memref<1x1xf32, #tpu.memory_space<smem>>
      memref.store %25, %arg4[%c0_14, %c0_15] : memref<1x1xf32, #tpu.memory_space<smem>>
    } else {
    }
    return
  }
  func.func @transform_0(%arg0: i32, %arg1: i32) -> (i32, i32) {
    %c1_i32 = arith.constant 1 : i32
    %0 = arith.muli %arg0, %c1_i32 : i32
    %1 = arith.addi %0, %arg1 : i32
    %c0_i32 = arith.constant 0 : i32
    %2 = arith.minsi %1, %c0_i32 : i32
    %c0_i32_0 = arith.constant 0 : i32
    %c0_i32_1 = arith.constant 0 : i32
    return %2, %c0_i32_0 : i32, i32
  }
  func.func @transform_1(%arg0: i32, %arg1: i32) -> (i32, i32) {
    %c1_i32 = arith.constant 1 : i32
    %0 = arith.muli %arg0, %c1_i32 : i32
    %1 = arith.addi %0, %arg1 : i32
    %c0_i32 = arith.constant 0 : i32
    %2 = arith.minsi %1, %c0_i32 : i32
    %c0_i32_0 = arith.constant 0 : i32
    %c0_i32_1 = arith.constant 0 : i32
    return %2, %c0_i32_0 : i32, i32
  }
  func.func @transform_2(%arg0: i32, %arg1: i32) -> (i32, i32) {
    %c0_i32 = arith.constant 0 : i32
    %c0_i32_0 = arith.constant 0 : i32
    return %arg0, %c0_i32 : i32, i32
  }
}

</mosaic_0001>

<llo_original>
// kernel: tpu_custom_call.1
$region0: #{tpu_custom_call.1}
  #allocation0 [shape = 'u32[]', space=smem, size = 0x4, offset = 0x4, fixed_abs, tag = 'smem constant byte address 0x4 - core index']
  #allocation1 [shape = 'u32[144,128]{1,0:T(1,128)}', space=vmem, size = 0x12000, scoped, tag = 'internal scratch']
  #allocation2 [shape = 'f32[1,2048]{1,0:T(1,128)}', space=vmem, size = 0x2000, scoped, tag = 'scratch operand']
  %s0 = inlined_call_operand.hbm [shape: f32[1,2048], index: 0, kind: input, shape index: {}]
  %s1 = inlined_call_operand.hbm [shape: f32[1,2048], index: 1, kind: input, shape index: {}]
  %s2 = inlined_call_operand.hbm [shape: f32[1,1], index: 2, kind: output, shape index: {}]
  %s3 = sld [smem:[#allocation0]]
  $region34: #{tpu_custom_call.1} parent=0
    _
  %s5 = ssub.s32 1, %s3
  %s6 = scalar_select 0, %s5, %s3
  $region1: #{tpu_custom_call.1} parent=0
    #allocation3 [shape = 'u8[8192]{0}', space=vmem, size = 0x2000, scoped, tag = 'input window, operand 0, single buffered']
    #allocation4 [shape = 's32[1]{0}', space=sflag, size = 0x4, scoped, tag = 'scoped memory for tpu_custom_call.1']
    #allocation5 [shape = 's32[1]{0}', space=sflag, size = 0x4, scoped, tag = 'scoped memory for tpu_custom_call.1']
    #allocation6 [shape = 'u8[8192]{0}', space=vmem, size = 0x2000, scoped, tag = 'input window, operand 1, single buffered']
    #allocation7 [shape = 's32[1]{0}', space=sflag, size = 0x4, scoped, tag = 'scoped memory for tpu_custom_call.1']
    #allocation8 [shape = 'u8[512]{0}', space=smem, size = 0x200, scoped, tag = 'output window, operand 0, single buffered']
    %7 = vsyncpa [#allocation4], 0
    %8 = vsyncpa [#allocation7], 0
    %9 = vsyncpa [#allocation5], 0
    // Predicated region
    $region2: #{tpu_custom_call.1} parent=1 // pred_check
      _
    $region3: #{tpu_custom_call.1} parent=1 // pred_check_branch
      %11 = sbr.rel (0) target = $region5
    $region4: #{tpu_custom_call.1} parent=1 // pred_region
      %s12 = sadd.s32 0, 0
      %p13 = scmp.lt.s32.totalorder %s12, 0
      %s14 = scalar_select %p13, %s12, 0
      %s16 = ssub.s32 256, 256
      %17 = vsyncadd [#allocation4], %s16
      %s18 = smul.addr %s14, 16
      %s19 = smul.addr %s18, 16
      %s20 = scalar_lea.hbm %s0, %s19
      %s22 = sshll.u32 [#allocation3], 4
      %s23 = int_to_ptr.vmem [resolvable:$true] %s22
      %25 = dma.hbm_to_vmem [thread:$0]  %s20, 256, %s23, [#allocation4]
    $region5: #{tpu_custom_call.1} parent=1 // pred_fallthru
      _
    // Predicated region
    $region6: #{tpu_custom_call.1} parent=1 // pred_check
      _
    $region7: #{tpu_custom_call.1} parent=1 // pred_check_branch
      %27 = sbr.rel (0) target = $region9
    $region8: #{tpu_custom_call.1} parent=1 // pred_region
      %s28 = sadd.s32 0, 0
      %p29 = scmp.lt.s32.totalorder %s28, 0
      %s30 = scalar_select %p29, %s28, 0
      %s32 = ssub.s32 256, 256
      %33 = vsyncadd [#allocation7], %s32
      %s34 = smul.addr %s30, 16
      %s35 = smul.addr %s34, 16
      %s36 = scalar_lea.hbm %s1, %s35
      %s38 = sshll.u32 [#allocation6], 4
      %s39 = int_to_ptr.vmem [resolvable:$true] %s38
      %41 = dma.hbm_to_vmem [thread:$0]  %s36, 256, %s39, [#allocation7]
    $region9: #{tpu_custom_call.1} parent=1 // pred_fallthru
      _
    // Predicated region
    $region10: #{tpu_custom_call.1} parent=1 // pred_check
      _
    $region11: #{tpu_custom_call.1} parent=1 // pred_check_branch
      %43 = sbr.rel (0) target = $region13
    $region12: #{tpu_custom_call.1} parent=1 // pred_region
      %44 = dma.done [#allocation4], 256
    $region13: #{tpu_custom_call.1} parent=1 // pred_fallthru
      _
    // Predicated region
    $region14: #{tpu_custom_call.1} parent=1 // pred_check
      _
    $region15: #{tpu_custom_call.1} parent=1 // pred_check_branch
      %46 = sbr.rel (0) target = $region17
    $region16: #{tpu_custom_call.1} parent=1 // pred_region
      %47 = dma.done [#allocation7], 256
    $region17: #{tpu_custom_call.1} parent=1 // pred_fallthru
      _
    %s48 = sadd.s32 0, 0
    %p49 = scmp.lt.s32.totalorder %s48, 0
    %s50 = scalar_select %p49, %s48, 0
    %s51 = sadd.s32 0, 0
    %p52 = scmp.lt.s32.totalorder %s51, 0
    %s53 = scalar_select %p52, %s51, 0
    %p54 = scmp.eq.s32.totalorder 0, 0
    // Predicated region
    $region18: #{tpu_custom_call.1} parent=1 // pred_check
      %p55 = pneg %p54
    $region19: #{tpu_custom_call.1} parent=1 // pred_check_branch
      %57 = sbr.rel (%p55) target = $region21
    $region20: #{tpu_custom_call.1} parent=1 // pred_region
      %58 = vst [vmem:[#allocation2] sm:$0xff] 0.0
      %59 = vst [vmem:[#allocation2 + $0x8] sm:$0xff] 0.0
    $region21: #{tpu_custom_call.1} parent=1 // pred_fallthru
      _
    %v60 = vld [vmem:[#allocation3] sm:$0xff]
    %v61 = vld [vmem:[#allocation3 + $0x8] sm:$0xff]
    %v62 = vld [vmem:[#allocation6] sm:$0xff]
    %v63 = vld [vmem:[#allocation6 + $0x8] sm:$0xff]
    %v64 = vsub.f32 1.0, %v62
    %v65 = vsub.f32 1.0, %v63
    %v66 = vmul.f32 %v64, %v64
    %v67 = vmul.f32 %v65, %v65
    %v68 = vsub.f32 1.0, %v60
    %v69 = vsub.f32 1.0, %v61
    %v70 = vlog2.pop %v68
    %v71 = vmul.f32 %v70, 0.6931472
    %v72 = vlog2.pop %v69
    %v73 = vmul.f32 %v72, 0.6931472
    %v74 = vmul.f32 %v60, %v60
    %v75 = vmul.f32 %v61, %v61
    %v76 = vmul.f32 %v71, %v74
    %v77 = vmul.f32 %v73, %v75
    %v78 = vmul.f32 %v66, %v66
    %v79 = vmul.f32 %v67, %v67
    %v80 = vmul.f32 %v76, %v78
    %v81 = vmul.f32 %v77, %v79
    %v82 = vld [vmem:[#allocation2] sm:$0xff]
    %v83 = vld [vmem:[#allocation2 + $0x8] sm:$0xff]
    %v84 = vadd.f32 %v82, %v80
    %v85 = vadd.f32 %v83, %v81
    %86 = vst [vmem:[#allocation2] sm:$0xff] %v84
    %87 = vst [vmem:[#allocation2 + $0x8] sm:$0xff] %v85
    // Predicated region
    $region22: #{tpu_custom_call.1} parent=1 // pred_check
      %p88 = pneg %p54
    $region23: #{tpu_custom_call.1} parent=1 // pred_check_branch
      %90 = sbr.rel (%p88) target = $region25
    $region24: #{tpu_custom_call.1} parent=1 // pred_region
      %v91 = vld [vmem:[#allocation2] sm:$0xff]
      %v92 = vld [vmem:[#allocation2 + $0x8] sm:$0xff]
      %v95 = vlaneseq
      %v96 = vshrl.u32 %v95, 7
      %v97 = vsub.s32 0, %v96
      %v98 = vrot.slane %v91, %v97
      %v99 = vlaneseq
      %v100 = vshrl.u32 %v99, 7
      %v101 = vsub.s32 1, %v100
      %v102 = vrot.slane %v91, %v101
      %v103 = vlaneseq
      %v104 = vshrl.u32 %v103, 7
      %v105 = vsub.s32 2, %v104
      %v106 = vrot.slane %v91, %v105
      %v107 = vlaneseq
      %v108 = vshrl.u32 %v107, 7
      %v109 = vsub.s32 3, %v108
      %v110 = vrot.slane %v91, %v109
      %v111 = vlaneseq
      %v112 = vshrl.u32 %v111, 7
      %v113 = vsub.s32 4, %v112
      %v114 = vrot.slane %v91, %v113
      %v115 = vlaneseq
      %v116 = vshrl.u32 %v115, 7
      %v117 = vsub.s32 5, %v116
      %v118 = vrot.slane %v91, %v117
      %v119 = vlaneseq
      %v120 = vshrl.u32 %v119, 7
      %v121 = vsub.s32 6, %v120
      %v122 = vrot.slane %v91, %v121
      %v123 = vlaneseq
      %v124 = vshrl.u32 %v123, 7
      %v125 = vsub.s32 7, %v124
      %v126 = vrot.slane %v91, %v125
      %v127 = vlaneseq
      %v128 = vshrl.u32 %v127, 7
      %v129 = vsub.s32 0, %v128
      %v130 = vrot.slane %v92, %v129
      %v131 = vlaneseq
      %v132 = vshrl.u32 %v131, 7
      %v133 = vsub.s32 1, %v132
      %v134 = vrot.slane %v92, %v133
      %v135 = vlaneseq
      %v136 = vshrl.u32 %v135, 7
      %v137 = vsub.s32 2, %v136
      %v138 = vrot.slane %v92, %v137
      %v139 = vlaneseq
      %v140 = vshrl.u32 %v139, 7
      %v141 = vsub.s32 3, %v140
      %v142 = vrot.slane %v92, %v141
      %v143 = vlaneseq
      %v144 = vshrl.u32 %v143, 7
      %v145 = vsub.s32 4, %v144
      %v146 = vrot.slane %v92, %v145
      %v147 = vlaneseq
      %v148 = vshrl.u32 %v147, 7
      %v149 = vsub.s32 5, %v148
      %v150 = vrot.slane %v92, %v149
      %v151 = vlaneseq
      %v152 = vshrl.u32 %v151, 7
      %v153 = vsub.s32 6, %v152
      %v154 = vrot.slane %v92, %v153
      %v155 = vlaneseq
      %v156 = vshrl.u32 %v155, 7
      %v157 = vsub.s32 7, %v156
      %v158 = vrot.slane %v92, %v157
      %vm175 = vcmask 1040384
      %v176 = vsel %vm175, %v98, 0.0
      %v177 = vsel %vm175, %v102, 0.0
      %v178 = vadd.f32 %v176, %v177
      %v179 = vsel %vm175, %v106, 0.0
      %v180 = vadd.f32 %v178, %v179
      %v181 = vsel %vm175, %v110, 0.0
      %v182 = vadd.f32 %v180, %v181
      %v183 = vsel %vm175, %v114, 0.0
      %v184 = vadd.f32 %v182, %v183
      %v185 = vsel %vm175, %v118, 0.0
      %v186 = vadd.f32 %v184, %v185
      %v187 = vsel %vm175, %v122, 0.0
      %v188 = vadd.f32 %v186, %v187
      %v189 = vsel %vm175, %v126, 0.0
      %v190 = vadd.f32 %v188, %v189
      %v191 = vsel %vm175, %v130, 0.0
      %v192 = vadd.f32 %v190, %v191
      %v193 = vsel %vm175, %v134, 0.0
      %v194 = vadd.f32 %v192, %v193
      %v195 = vsel %vm175, %v138, 0.0
      %v196 = vadd.f32 %v194, %v195
      %v197 = vsel %vm175, %v142, 0.0
      %v198 = vadd.f32 %v196, %v197
      %v199 = vsel %vm175, %v146, 0.0
      %v200 = vadd.f32 %v198, %v199
      %v201 = vsel %vm175, %v150, 0.0
      %v202 = vadd.f32 %v200, %v201
      %v203 = vsel %vm175, %v154, 0.0
      %v204 = vadd.f32 %v202, %v203
      %v205 = vsel %vm175, %v158, 0.0
      %v206 = vadd.f32 %v204, %v205
      %207 = vadd.xlane.f32.xlu0 %v206
      %v208 = vpop.xlane.xlu0 %207
      %v209 = vrot.slane %v208, 4
      %v210 = vadd.f32 %v208, %v209
      %v211 = vrot.slane %v210, 2
      %v212 = vadd.f32 %v210, %v211
      %v213 = vrot.slane %v212, 1
      %v214 = vadd.f32 %v212, %v213
      %s215 = vtos %v214
      %s216 = scalar_lea.smem [#allocation8], 0
      %217 = sst [smem:[%s216]] %s215
    $region25: #{tpu_custom_call.1} parent=1 // pred_fallthru
      _
    // Predicated region
    $region26: #{tpu_custom_call.1} parent=1 // pred_check
      _
    $region27: #{tpu_custom_call.1} parent=1 // pred_check_branch
      %219 = sbr.rel (0) target = $region29
    $region28: #{tpu_custom_call.1} parent=1 // pred_region
      %s221 = ssub.s32 16, 16
      %222 = vsyncadd [#allocation5], %s221
      %225 = dma.smem_to_hbm [#allocation8], 16, %s2, [#allocation5]
    $region29: #{tpu_custom_call.1} parent=1 // pred_fallthru
      _
    // Predicated region
    $region30: #{tpu_custom_call.1} parent=1 // pred_check
      _
    $region31: #{tpu_custom_call.1} parent=1 // pred_check_branch
      %227 = sbr.rel (0) target = $region33
    $region32: #{tpu_custom_call.1} parent=1 // pred_region
      %228 = dma.done [#allocation5], 16
    $region33: #{tpu_custom_call.1} parent=1 // pred_fallthru
      _
    %229 = sfence
    %230 = vsyncpa [#allocation4], 1
    %231 = vsyncpa [#allocation7], 1
    %232 = vsyncpa [#allocation5], 1

</llo_original>
